<compile_context>
chip_gen: v7x
topology: tpu7x:2x2x1
jax: 0.10.0
libtpu: 0.0.40
codegen_flags: <defaults>
</compile_context>

<pallas_src>
import jax
import jax.numpy as jnp
from jax.experimental import pallas as pl
from jax.experimental.pallas import tpu as pltpu

D_X, D_CTX, HIDDEN = 2, 4, 32        # flow dim (must be 1 or 2), context dim, net width
D_IN = D_X + D_CTX                   # fused [x ; context] feature dim


def _round_up(n, m):
    return pl.cdiv(n, m) * m


def _ires_fwd_kernel(xc_ref, w1t_ref, b1_ref, w2t_ref, b2_ref, coefft_ref,
                     y_ref, nld_ref):
    """One batch tile, feature-major: batch on the lane (last) axis.

    xc_ref     : (6, TB)   fused [x ; context]
    w1t_ref    : (H, 6)    stacked first-layer weight, transposed
    b1_ref     : (H, 1)
    w2t_ref    : (2, H)
    b2_ref     : (2, 1)
    coefft_ref : (4, H)    coefft[2*i+j, k] = W2[k, i] * W1x[j, k]
    y_ref      : (2, TB)   x + g
    nld_ref    : (1, TB)   -log|det|
    """
    xc = xc_ref[...]                                                   # (6, TB)

    # First layer: x- and context-paths fused into one padded MXU matmul.
    pre = jnp.dot(w1t_ref[...], xc,
                  preferred_element_type=jnp.float32) + b1_ref[...]    # (H, TB)
    h = jnp.tanh(pre)                                                  # EUP, full vregs

    # Second layer.
    g = jnp.dot(w2t_ref[...], h,
                preferred_element_type=jnp.float32) + b2_ref[...]      # (2, TB)
    y_ref[...] = xc[:D_X, :] + g                                       # lane-dense store

    # Analytic batch Jacobian of g w.r.t. x, contracted over the hidden dim:
    #   J[b, i, j] = sum_k W2[k, i] * (1 - h[k, b]^2) * W1x[j, k]
    s = 1.0 - h * h                                                    # (H, TB)
    jac = jnp.dot(coefft_ref[...], s,
                  preferred_element_type=jnp.float32)                  # (4, TB)
    det = ((jac[0:1, :] + 1.0) * (jac[3:4, :] + 1.0)
           - jac[1:2, :] * jac[2:3, :])                                # (1, TB)
    nld_ref[...] = -jnp.log(jnp.abs(det))                              # lane-dense store


def prepare_params(params):
    """Weight-only glue, computed once outside the hot path."""
    w1x, w1c, b1, w2, b2 = params
    w1t = jnp.concatenate([w1x, w1c], axis=0).T.astype(jnp.float32)    # (H, 6)
    b1c = b1.reshape(HIDDEN, 1).astype(jnp.float32)                    # (H, 1)
    w2t = w2.T.astype(jnp.float32)                                     # (2, H)
    b2c = b2.reshape(D_X, 1).astype(jnp.float32)                       # (2, 1)
    # coeff[k, 2*i+j] = W2[k, i] * W1x[j, k]; kernel wants its transpose (4, H).
    coefft = (w2[:, :, None] * w1x.T[:, None, :]) \
        .reshape(HIDDEN, D_X * D_X).T.astype(jnp.float32)              # (4, H)
    return w1t, b1c, w2t, b2c, coefft


def conditional_iresblock_forward(x, context, prepared, *, tb=None):
    """x: (B, 2) f32, context: (B, 4) f32 -> (x + g, -log|det|)."""
    w1t, b1c, w2t, b2c, coefft = prepared
    B = x.shape[0]
    if tb is None:
        # Big tiles amortize the ~0.35us per-step overhead; cap well below VMEM.
        tb = min(8192, _round_up(B, 128))
    B_pad = _round_up(B, tb)

    # Fuse and go feature-major: batch on the lane axis.
    xc = jnp.concatenate([x, context], axis=1).T.astype(jnp.float32)   # (6, B)
    if B_pad != B:
        xc = jnp.pad(xc, ((0, 0), (0, B_pad - B)))

    grid = (B_pad // tb,)

    flops = 2 * B_pad * (D_IN * HIDDEN + HIDDEN * D_X + HIDDEN * D_X * D_X) + 8 * B_pad
    transcendentals = B_pad * (HIDDEN + 1)                 # tanh + log
    bytes_accessed = 4 * B_pad * (D_IN + D_X + 1)          # streamed I/O (weights ~0)

    y_fm, nld_fm = pl.pallas_call(
        _ires_fwd_kernel,
        out_shape=(jax.ShapeDtypeStruct((D_X, B_pad), jnp.float32),
                   jax.ShapeDtypeStruct((1, B_pad), jnp.float32)),
        grid=grid,
        in_specs=[
            pl.BlockSpec((D_IN, tb), lambda i: (0, i)),          # xc: tiled over batch
            pl.BlockSpec((HIDDEN, D_IN), lambda i: (0, 0)),      # weights: resident
            pl.BlockSpec((HIDDEN, 1), lambda i: (0, 0)),
            pl.BlockSpec((D_X, HIDDEN), lambda i: (0, 0)),
            pl.BlockSpec((D_X, 1), lambda i: (0, 0)),
            pl.BlockSpec((D_X * D_X, HIDDEN), lambda i: (0, 0)),
        ],
        out_specs=(pl.BlockSpec((D_X, tb), lambda i: (0, i)),
                   pl.BlockSpec((1, tb), lambda i: (0, i))),
        compiler_params=pltpu.CompilerParams(
            dimension_semantics=("parallel",)),
        cost_estimate=pl.CostEstimate(flops=flops,
                                      transcendentals=transcendentals,
                                      bytes_accessed=bytes_accessed),
    )(xc, w1t, b1c, w2t, b2c, coefft)

    # Back to the module's (B, 2) / (B, 1) convention.
    y = y_fm[:, :B].T
    neg_logabsdet = nld_fm[:, :B].T
    return y, neg_logabsdet


# ---------- deterministic parameter init (synthetic "net") ----------
def init_params(key):
    k1, k2, k3, k4, k5 = jax.random.split(key, 5)
    # small scale so the residual map is well-conditioned (iResBlock-style)
    w1x = 0.3 * jax.random.normal(k1, (D_X, HIDDEN), jnp.float32)
    w1c = 0.3 * jax.random.normal(k2, (D_CTX, HIDDEN), jnp.float32)
    b1 = 0.1 * jax.random.normal(k3, (1, HIDDEN), jnp.float32)
    w2 = 0.3 * jax.random.normal(k4, (HIDDEN, D_X), jnp.float32)
    b2 = 0.1 * jax.random.normal(k5, (1, D_X), jnp.float32)
    return w1x, w1c, b1, w2, b2


# ---------- pure-JAX reference (autodiff Jacobian, mirrors torch semantics) ----------
def _net_ref(x, c, params):
    w1x, w1c, b1, w2, b2 = params
    return jnp.tanh(x @ w1x + c @ w1c + b1) @ w2 + b2


def forward_ref(x, c, params):
    g = _net_ref(x, c, params)

    def per_sample_jac(xb, cb):
        return jax.jacfwd(lambda xx: _net_ref(xx[None, :], cb[None, :], params)[0])(xb)

    jac = jax.vmap(per_sample_jac)(x, c)               # (B, 2, 2)
    det = (jac[:, 0, 0] + 1.0) * (jac[:, 1, 1] + 1.0) - jac[:, 0, 1] * jac[:, 1, 0]
    return x + g, -jnp.log(jnp.abs(det))[:, None]


# TODO(synk): inverse()/_inverse_fixed_point (data-dependent while-loop) is not part
# of forward() and is left unimplemented.

if __name__ == "__main__":
    key = jax.random.PRNGKey(0)
    kx, kc, kp = jax.random.split(key, 3)
    B = 200                                            # exercises padding (B_pad=256)
    x = jax.random.normal(kx, (B, D_X), jnp.float32)
    ctx = jax.random.normal(kc, (B, D_CTX), jnp.float32)
    params = init_params(kp)
    prepared = prepare_params(params)                  # weight glue, done once

    y, neg_logdet = conditional_iresblock_forward(x, ctx, prepared, tb=128)
    jax.block_until_ready((y, neg_logdet))

    y_ref, nld_ref = forward_ref(x, ctx, params)
    assert y.shape == (B, D_X) and neg_logdet.shape == (B, 1)
    assert jnp.allclose(y, y_ref, atol=2e-3, rtol=2e-3)
    assert jnp.allclose(neg_logdet, nld_ref, atol=2e-3, rtol=2e-3)
    print("KERNEL_OK")
</pallas_src>

<mosaic_0001>
module attributes {stable_mosaic.version = 11 : i64} {
  func.func @_ires_fwd_kernel(%arg0: i32, %arg1: memref<6x128xf32, #tpu.memory_space<vmem>>, %arg2: memref<32x6xf32, #tpu.memory_space<vmem>>, %arg3: memref<32x1xf32, #tpu.memory_space<vmem>>, %arg4: memref<2x32xf32, #tpu.memory_space<vmem>>, %arg5: memref<2x1xf32, #tpu.memory_space<vmem>>, %arg6: memref<4x32xf32, #tpu.memory_space<vmem>>, %arg7: memref<2x128xf32, #tpu.memory_space<vmem>>, %arg8: memref<1x128xf32, #tpu.memory_space<vmem>>) attributes {dimension_semantics = [#tpu.dimension_semantics<parallel>], iteration_bounds = array<i64: 2>, scalar_prefetch = 0 : i64, scratch_operands = 0 : i64, tpu.core_type = #tpu.core_type<tc>, window_params = [{transform_indices = @transform_0, window_bounds = array<i64: 6, 128>}, {pipeline_mode = #tpu.pipeline_mode<synchronous>, transform_indices = @transform_1, window_bounds = array<i64: 32, 6>}, {pipeline_mode = #tpu.pipeline_mode<synchronous>, transform_indices = @transform_2, window_bounds = array<i64: 32, 1>}, {pipeline_mode = #tpu.pipeline_mode<synchronous>, transform_indices = @transform_3, window_bounds = array<i64: 2, 32>}, {pipeline_mode = #tpu.pipeline_mode<synchronous>, transform_indices = @transform_4, window_bounds = array<i64: 2, 1>}, {pipeline_mode = #tpu.pipeline_mode<synchronous>, transform_indices = @transform_5, window_bounds = array<i64: 4, 32>}, {transform_indices = @transform_6, window_bounds = array<i64: 2, 128>}, {transform_indices = @transform_7, window_bounds = array<i64: 1, 128>}]} {
    %c0 = arith.constant 0 : index
    %c0_0 = arith.constant 0 : index
    %0 = vector.load %arg1[%c0, %c0_0] : memref<6x128xf32, #tpu.memory_space<vmem>>, vector<6x128xf32>
    %c0_1 = arith.constant 0 : index
    %c0_2 = arith.constant 0 : index
    %1 = vector.load %arg2[%c0_1, %c0_2] : memref<32x6xf32, #tpu.memory_space<vmem>>, vector<32x6xf32>
    %cst = arith.constant dense<0.000000e+00> : vector<32x128xf32>
    %2 = tpu.matmul %1, %0, %cst {dimension_numbers = #tpu.dot_dimension_numbers<[1], [0], [0], [1], [0, 0, 1, 1], [], []>} : vector<32x6xf32>, vector<6x128xf32>, vector<32x128xf32> -> vector<32x128xf32>
    %c0_3 = arith.constant 0 : index
    %c0_4 = arith.constant 0 : index
    %3 = vector.load %arg3[%c0_3, %c0_4] : memref<32x1xf32, #tpu.memory_space<vmem>>, vector<32x1xf32>
    %4 = vector.broadcast %3 : vector<32x1xf32> to vector<32x128xf32>
    %5 = arith.addf %2, %4 : vector<32x128xf32>
    %6 = math.tanh %5 : vector<32x128xf32>
    %c0_5 = arith.constant 0 : index
    %c0_6 = arith.constant 0 : index
    %7 = vector.load %arg4[%c0_5, %c0_6] : memref<2x32xf32, #tpu.memory_space<vmem>>, vector<2x32xf32>
    %cst_7 = arith.constant dense<0.000000e+00> : vector<2x128xf32>
    %8 = tpu.matmul %7, %6, %cst_7 {dimension_numbers = #tpu.dot_dimension_numbers<[1], [0], [0], [1], [0, 0, 1, 1], [], []>} : vector<2x32xf32>, vector<32x128xf32>, vector<2x128xf32> -> vector<2x128xf32>
    %c0_8 = arith.constant 0 : index
    %c0_9 = arith.constant 0 : index
    %9 = vector.load %arg5[%c0_8, %c0_9] : memref<2x1xf32, #tpu.memory_space<vmem>>, vector<2x1xf32>
    %10 = vector.broadcast %9 : vector<2x1xf32> to vector<2x128xf32>
    %11 = arith.addf %8, %10 : vector<2x128xf32>
    %12 = vector.extract_strided_slice %0 {offsets = [0, 0], sizes = [2, 128], strides = [1, 1]} : vector<6x128xf32> to vector<2x128xf32>
    %13 = arith.addf %12, %11 : vector<2x128xf32>
    %c0_10 = arith.constant 0 : index
    %c0_11 = arith.constant 0 : index
    %14 = vector.load %arg7[%c0_10, %c0_11] : memref<2x128xf32, #tpu.memory_space<vmem>>, vector<2x128xf32>
    tpu.vector_store %arg7[%c0_10, %c0_11], %13 {strides = array<i32>} : memref<2x128xf32, #tpu.memory_space<vmem>>, vector<2x128xf32>,
    %15 = arith.mulf %6, %6 : vector<32x128xf32>
    %cst_12 = arith.constant 1.000000e+00 : f32
    %16 = vector.broadcast %cst_12 : f32 to vector<32x128xf32>
    %17 = arith.subf %16, %15 : vector<32x128xf32>
    %c0_13 = arith.constant 0 : index
    %c0_14 = arith.constant 0 : index
    %18 = vector.load %arg6[%c0_13, %c0_14] : memref<4x32xf32, #tpu.memory_space<vmem>>, vector<4x32xf32>
    %cst_15 = arith.constant dense<0.000000e+00> : vector<4x128xf32>
    %19 = tpu.matmul %18, %17, %cst_15 {dimension_numbers = #tpu.dot_dimension_numbers<[1], [0], [0], [1], [0, 0, 1, 1], [], []>} : vector<4x32xf32>, vector<32x128xf32>, vector<4x128xf32> -> vector<4x128xf32>
    %20 = vector.extract_strided_slice %19 {offsets = [0, 0], sizes = [1, 128], strides = [1, 1]} : vector<4x128xf32> to vector<1x128xf32>
    %cst_16 = arith.constant 1.000000e+00 : f32
    %21 = vector.broadcast %cst_16 : f32 to vector<1x128xf32>
    %22 = arith.addf %20, %21 : vector<1x128xf32>
    %23 = vector.extract_strided_slice %19 {offsets = [3, 0], sizes = [1, 128], strides = [1, 1]} : vector<4x128xf32> to vector<1x128xf32>
    %cst_17 = arith.constant 1.000000e+00 : f32
    %24 = vector.broadcast %cst_17 : f32 to vector<1x128xf32>
    %25 = arith.addf %23, %24 : vector<1x128xf32>
    %26 = arith.mulf %22, %25 : vector<1x128xf32>
    %27 = vector.extract_strided_slice %19 {offsets = [1, 0], sizes = [1, 128], strides = [1, 1]} : vector<4x128xf32> to vector<1x128xf32>
    %28 = vector.extract_strided_slice %19 {offsets = [2, 0], sizes = [1, 128], strides = [1, 1]} : vector<4x128xf32> to vector<1x128xf32>
    %29 = arith.mulf %27, %28 : vector<1x128xf32>
    %30 = arith.subf %26, %29 : vector<1x128xf32>
    %31 = math.absf %30 : vector<1x128xf32>
    %32 = math.log %31 : vector<1x128xf32>
    %cst_18 = arith.constant 0.000000e+00 : f32
    %33 = vector.broadcast %cst_18 : f32 to vector<1x128xf32>
    %34 = arith.subf %33, %32 : vector<1x128xf32>
    %c0_19 = arith.constant 0 : index
    %c0_20 = arith.constant 0 : index
    %35 = vector.load %arg8[%c0_19, %c0_20] : memref<1x128xf32, #tpu.memory_space<vmem>>, vector<1x128xf32>
    tpu.vector_store %arg8[%c0_19, %c0_20], %34 {strides = array<i32>} : memref<1x128xf32, #tpu.memory_space<vmem>>, vector<1x128xf32>,
    return
  }
  func.func @transform_0(%arg0: i32) -> (i32, i32) {
    %c0_i32 = arith.constant 0 : i32
    %c0_i32_0 = arith.constant 0 : i32
    return %c0_i32, %arg0 : i32, i32
  }
  func.func @transform_1(%arg0: i32) -> (i32, i32) {
    %c0_i32 = arith.constant 0 : i32
    %c0_i32_0 = arith.constant 0 : i32
    %c0_i32_1 = arith.constant 0 : i32
    return %c0_i32, %c0_i32_0 : i32, i32
  }
  func.func @transform_2(%arg0: i32) -> (i32, i32) {
    %c0_i32 = arith.constant 0 : i32
    %c0_i32_0 = arith.constant 0 : i32
    %c0_i32_1 = arith.constant 0 : i32
    return %c0_i32, %c0_i32_0 : i32, i32
  }
  func.func @transform_3(%arg0: i32) -> (i32, i32) {
    %c0_i32 = arith.constant 0 : i32
    %c0_i32_0 = arith.constant 0 : i32
    %c0_i32_1 = arith.constant 0 : i32
    return %c0_i32, %c0_i32_0 : i32, i32
  }
  func.func @transform_4(%arg0: i32) -> (i32, i32) {
    %c0_i32 = arith.constant 0 : i32
    %c0_i32_0 = arith.constant 0 : i32
    %c0_i32_1 = arith.constant 0 : i32
    return %c0_i32, %c0_i32_0 : i32, i32
  }
  func.func @transform_5(%arg0: i32) -> (i32, i32) {
    %c0_i32 = arith.constant 0 : i32
    %c0_i32_0 = arith.constant 0 : i32
    %c0_i32_1 = arith.constant 0 : i32
    return %c0_i32, %c0_i32_0 : i32, i32
  }
  func.func @transform_6(%arg0: i32) -> (i32, i32) {
    %c0_i32 = arith.constant 0 : i32
    %c0_i32_0 = arith.constant 0 : i32
    return %c0_i32, %arg0 : i32, i32
  }
  func.func @transform_7(%arg0: i32) -> (i32, i32) {
    %c0_i32 = arith.constant 0 : i32
    %c0_i32_0 = arith.constant 0 : i32
    return %c0_i32, %arg0 : i32, i32
  }
}

</mosaic_0001>

<llo_original>
// kernel: tpu_custom_call.1
$region0: #{tpu_custom_call.1}
  #allocation0 [shape = 'u32[]', space=smem, size = 0x4, offset = 0x4, fixed_abs, tag = 'smem constant byte address 0x4 - core index']
  #allocation1 [shape = 'u32[144,128]{1,0:T(1,128)}', space=vmem, size = 0x12000, scoped, tag = 'internal scratch']
  %s0 = inlined_call_operand.vmem [shape: f32[6,256], index: 0, kind: input, shape index: {}]
  %s1 = inlined_call_operand.vmem [shape: f32[32,6], index: 1, kind: input, shape index: {}]
  %s2 = inlined_call_operand.vmem [shape: f32[32,1], index: 2, kind: input, shape index: {}]
  %s3 = inlined_call_operand.vmem [shape: f32[2,32], index: 3, kind: input, shape index: {}]
  %s4 = inlined_call_operand.vmem [shape: f32[2,1], index: 4, kind: input, shape index: {}]
  %s5 = inlined_call_operand.vmem [shape: f32[4,32], index: 5, kind: input, shape index: {}]
  %s6 = inlined_call_operand.hbm [shape: f32[2,256], index: 6, kind: output, shape index: {0}]
  %s7 = inlined_call_operand.hbm [shape: f32[1,256], index: 7, kind: output, shape index: {1}]
  %8 = xla_tuple %s6, %s7
  %s9 = sld [smem:[#allocation0]]
  $region65: #{tpu_custom_call.1} parent=0
    _
  %s11 = ssub.s32 1, %s9
  %s12 = scalar_select 0, %s11, %s9
  $region1: #{tpu_custom_call.1} parent=0
    #allocation2 [shape = 'u8[2048]{0}', space=vmem, size = 0x800, scoped, tag = 'output window, operand 0']
    #allocation3 [shape = 's32[2]{0}', space=sflag, size = 0x8, scoped, tag = 'scoped memory for tpu_custom_call.1']
    #allocation4 [shape = 'u8[1024]{0}', space=vmem, size = 0x400, scoped, tag = 'output window, operand 1']
    #allocation5 [shape = 's32[2]{0}', space=sflag, size = 0x8, scoped, tag = 'scoped memory for tpu_custom_call.1']
    %13 = vsyncpa [#allocation3], 0
    %s14 = scalar_lea.sflag [#allocation3], 1
    %15 = vsyncpa %s14, 0
    %16 = vsyncpa [#allocation5], 0
    %s17 = scalar_lea.sflag [#allocation5], 1
    %18 = vsyncpa %s17, 0
    loop: start=0, step=1, limit=4
    $region2: #{tpu_custom_call.1} parent=1 // loop_pre_header
      _
    $region3: #{tpu_custom_call.1} parent=1 // loop_header
      %s20 = sphi 0, %s24
      %p21 = scmp.ge.s32.totalorder %s20, 4
      %s30 = sphi 0, %s32
      %s33 = sphi 0, %s30
      %s34 = sphi 0, %s33
      %s50 = sphi 0, %s34
      %s54 = sphi 0, %s54
      %s56 = sphi 0, %s54
      %s57 = sphi 0, %s56
      %s71 = sphi 0, %s57
      %s75 = sphi 0, %s75
      %s77 = sphi 0, %s75
      %s78 = sphi 0, %s77
      %s92 = sphi 0, %s78
      %s96 = sphi 0, %s96
      %s98 = sphi 0, %s96
      %s99 = sphi 0, %s98
      %s113 = sphi 0, %s99
      %s117 = sphi 0, %s117
      %s119 = sphi 0, %s117
      %s120 = sphi 0, %s119
      %s134 = sphi 0, %s120
      %s138 = sphi 0, %s138
      %s140 = sphi 0, %s138
      %s141 = sphi 0, %s140
      %s155 = sphi 0, %s141
      %s161 = sphi 0, %s163
      %s164 = sphi 0, %s161
      %s165 = sphi 0, %s164
      %s181 = sphi 0, %s165
      %s187 = sphi 0, %s189
      %s190 = sphi 0, %s187
      %s191 = sphi 0, %s190
      %s207 = sphi 0, %s191
    $region4: #{tpu_custom_call.1} parent=1 // loop_header_branch
      %23 = sbr.rel (%p21) target = $region8
    $region5: #{tpu_custom_call.1} parent=1 // loop_body
      %s25 = ssub.s32 %s20, 1
      %s26 = ssub.s32 %s20, 2
      %s27 = sadd.s32 %s20, 1
      %s28 = ssub.s32 %s20, %s27
      %p29 = scmp.eq.s32.totalorder %s28, 0
      %s31 = sadd.s32 %s30, 1
      %s32 = scalar_select %p29, %s30, %s31
      %p35 = pneg %p29
      %p36 = scmp.eq.s32.totalorder %s20, 1
      %p37 = por %p35, %p36
      %p38 = scmp.ne.s32.totalorder %s30, %s33
      %p39 = scmp.eq.s32.totalorder %s20, 0
      %p40 = por %p38, %p39
      %p41 = scmp.ne.s32.totalorder %s30, %s33
      %p42 = scmp.eq.s32.totalorder %s25, 1
      %p43 = por %p41, %p42
      %p44 = scmp.ne.s32.totalorder %s33, %s34
      %p45 = scmp.eq.s32.totalorder %s25, 0
      %p46 = por %p44, %p45
      %p47 = scmp.ne.s32.totalorder %s33, %s34
      %p48 = scmp.eq.s32.totalorder %s26, 1
      %p49 = por %p47, %p48
      %p51 = scmp.ne.s32.totalorder %s34, %s50
      %p52 = scmp.eq.s32.totalorder %s26, 0
      %p53 = por %p51, %p52
      %s55 = sadd.s32 %s54, 1
      %p58 = scmp.eq.s32.totalorder %s20, 1
      %p59 = scmp.ne.s32.totalorder %s54, %s56
      %p60 = scmp.eq.s32.totalorder %s20, 0
      %p61 = por %p59, %p60
      %p62 = scmp.ne.s32.totalorder %s54, %s56
      %p63 = scmp.eq.s32.totalorder %s25, 1
      %p64 = por %p62, %p63
      %p65 = scmp.ne.s32.totalorder %s56, %s57
      %p66 = scmp.eq.s32.totalorder %s25, 0
      %p67 = por %p65, %p66
      %p68 = scmp.ne.s32.totalorder %s56, %s57
      %p69 = scmp.eq.s32.totalorder %s26, 1
      %p70 = por %p68, %p69
      %p72 = scmp.ne.s32.totalorder %s57, %s71
      %p73 = scmp.eq.s32.totalorder %s26, 0
      %p74 = por %p72, %p73
      %s76 = sadd.s32 %s75, 1
      %p79 = scmp.eq.s32.totalorder %s20, 1
      %p80 = scmp.ne.s32.totalorder %s75, %s77
      %p81 = scmp.eq.s32.totalorder %s20, 0
      %p82 = por %p80, %p81
      %p83 = scmp.ne.s32.totalorder %s75, %s77
      %p84 = scmp.eq.s32.totalorder %s25, 1
      %p85 = por %p83, %p84
      %p86 = scmp.ne.s32.totalorder %s77, %s78
      %p87 = scmp.eq.s32.totalorder %s25, 0
      %p88 = por %p86, %p87
      %p89 = scmp.ne.s32.totalorder %s77, %s78
      %p90 = scmp.eq.s32.totalorder %s26, 1
      %p91 = por %p89, %p90
      %p93 = scmp.ne.s32.totalorder %s78, %s92
      %p94 = scmp.eq.s32.totalorder %s26, 0
      %p95 = por %p93, %p94
      %s97 = sadd.s32 %s96, 1
      %p100 = scmp.eq.s32.totalorder %s20, 1
      %p101 = scmp.ne.s32.totalorder %s96, %s98
      %p102 = scmp.eq.s32.totalorder %s20, 0
      %p103 = por %p101, %p102
      %p104 = scmp.ne.s32.totalorder %s96, %s98
      %p105 = scmp.eq.s32.totalorder %s25, 1
      %p106 = por %p104, %p105
      %p107 = scmp.ne.s32.totalorder %s98, %s99
      %p108 = scmp.eq.s32.totalorder %s25, 0
      %p109 = por %p107, %p108
      %p110 = scmp.ne.s32.totalorder %s98, %s99
      %p111 = scmp.eq.s32.totalorder %s26, 1
      %p112 = por %p110, %p111
      %p114 = scmp.ne.s32.totalorder %s99, %s113
      %p115 = scmp.eq.s32.totalorder %s26, 0
      %p116 = por %p114, %p115
      %s118 = sadd.s32 %s117, 1
      %p121 = scmp.eq.s32.totalorder %s20, 1
      %p122 = scmp.ne.s32.totalorder %s117, %s119
      %p123 = scmp.eq.s32.totalorder %s20, 0
      %p124 = por %p122, %p123
      %p125 = scmp.ne.s32.totalorder %s117, %s119
      %p126 = scmp.eq.s32.totalorder %s25, 1
      %p127 = por %p125, %p126
      %p128 = scmp.ne.s32.totalorder %s119, %s120
      %p129 = scmp.eq.s32.totalorder %s25, 0
      %p130 = por %p128, %p129
      %p131 = scmp.ne.s32.totalorder %s119, %s120
      %p132 = scmp.eq.s32.totalorder %s26, 1
      %p133 = por %p131, %p132
      %p135 = scmp.ne.s32.totalorder %s120, %s134
      %p136 = scmp.eq.s32.totalorder %s26, 0
      %p137 = por %p135, %p136
      %s139 = sadd.s32 %s138, 1
      %p142 = scmp.eq.s32.totalorder %s20, 1
      %p143 = scmp.ne.s32.totalorder %s138, %s140
      %p144 = scmp.eq.s32.totalorder %s20, 0
      %p145 = por %p143, %p144
      %p146 = scmp.ne.s32.totalorder %s138, %s140
      %p147 = scmp.eq.s32.totalorder %s25, 1
      %p148 = por %p146, %p147
      %p149 = scmp.ne.s32.totalorder %s140, %s141
      %p150 = scmp.eq.s32.totalorder %s25, 0
      %p151 = por %p149, %p150
      %p152 = scmp.ne.s32.totalorder %s140, %s141
      %p153 = scmp.eq.s32.totalorder %s26, 1
      %p154 = por %p152, %p153
      %p156 = scmp.ne.s32.totalorder %s141, %s155
      %p157 = scmp.eq.s32.totalorder %s26, 0
      %p158 = por %p156, %p157
      %s159 = ssub.s32 %s20, %s27
      %p160 = scmp.eq.s32.totalorder %s159, 0
      %s162 = sadd.s32 %s161, 1
      %s163 = scalar_select %p160, %s161, %s162
      %p166 = pneg %p160
      %p167 = scmp.eq.s32.totalorder %s20, 1
      %p168 = por %p166, %p167
      %p169 = scmp.ne.s32.totalorder %s161, %s164
      %p170 = scmp.eq.s32.totalorder %s20, 0
      %p171 = por %p169, %p170
      %p172 = scmp.ne.s32.totalorder %s161, %s164
      %p173 = scmp.eq.s32.totalorder %s25, 1
      %p174 = por %p172, %p173
      %p175 = scmp.ne.s32.totalorder %s164, %s165
      %p176 = scmp.eq.s32.totalorder %s25, 0
      %p177 = por %p175, %p176
      %p178 = scmp.ne.s32.totalorder %s164, %s165
      %p179 = scmp.eq.s32.totalorder %s26, 1
      %p180 = por %p178, %p179
      %p182 = scmp.ne.s32.totalorder %s165, %s181
      %p183 = scmp.eq.s32.totalorder %s26, 0
      %p184 = por %p182, %p183
      %s185 = ssub.s32 %s20, %s27
      %p186 = scmp.eq.s32.totalorder %s185, 0
      %s188 = sadd.s32 %s187, 1
      %s189 = scalar_select %p186, %s187, %s188
      %p192 = pneg %p186
      %p193 = scmp.eq.s32.totalorder %s20, 1
      %p194 = por %p192, %p193
      %p195 = scmp.ne.s32.totalorder %s187, %s190
      %p196 = scmp.eq.s32.totalorder %s20, 0
      %p197 = por %p195, %p196
      %p198 = scmp.ne.s32.totalorder %s187, %s190
      %p199 = scmp.eq.s32.totalorder %s25, 1
      %p200 = por %p198, %p199
      %p201 = scmp.ne.s32.totalorder %s190, %s191
      %p202 = scmp.eq.s32.totalorder %s25, 0
      %p203 = por %p201, %p202
      %p204 = scmp.ne.s32.totalorder %s190, %s191
      %p205 = scmp.eq.s32.totalorder %s26, 1
      %p206 = por %p204, %p205
      %p208 = scmp.ne.s32.totalorder %s191, %s207
      %p209 = scmp.eq.s32.totalorder %s26, 0
      %p210 = por %p208, %p209
      %p211 = scmp.le.s32.totalorder 1, %s20
      %p212 = scmp.lt.s32.totalorder %s20, 3
      %p213 = pnand %p211, %p212
      %p214 = pneg %p213
      // Predicated region
      $region9: #{tpu_custom_call.1} parent=5 // pred_check
        _
      $region10: #{tpu_custom_call.1} parent=5 // pred_check_branch
        %216 = sbr.rel (%p213) target = $region12
      $region11: #{tpu_custom_call.1} parent=5 // pred_region
        %s217 = ssub.s32 %s20, 1
        // Predicated region
        $region13: #{tpu_custom_call.1} parent=11 // pred_check
          %p218 = pneg %p67
        $region14: #{tpu_custom_call.1} parent=11 // pred_check_branch
          %220 = sbr.rel (%p218) target = $region16
        $region15: #{tpu_custom_call.1} parent=11 // pred_region
          _
        $region16: #{tpu_custom_call.1} parent=11 // pred_fallthru
          _
        // Predicated region
        $region17: #{tpu_custom_call.1} parent=11 // pred_check
          %p221 = pneg %p88
        $region18: #{tpu_custom_call.1} parent=11 // pred_check_branch
          %223 = sbr.rel (%p221) target = $region20
        $region19: #{tpu_custom_call.1} parent=11 // pred_region
          _
        $region20: #{tpu_custom_call.1} parent=11 // pred_fallthru
          _
        // Predicated region
        $region21: #{tpu_custom_call.1} parent=11 // pred_check
          %p224 = pneg %p109
        $region22: #{tpu_custom_call.1} parent=11 // pred_check_branch
          %226 = sbr.rel (%p224) target = $region24
        $region23: #{tpu_custom_call.1} parent=11 // pred_region
          _
        $region24: #{tpu_custom_call.1} parent=11 // pred_fallthru
          _
        // Predicated region
        $region25: #{tpu_custom_call.1} parent=11 // pred_check
          %p227 = pneg %p130
        $region26: #{tpu_custom_call.1} parent=11 // pred_check_branch
          %229 = sbr.rel (%p227) target = $region28
        $region27: #{tpu_custom_call.1} parent=11 // pred_region
          _
        $region28: #{tpu_custom_call.1} parent=11 // pred_fallthru
          _
        // Predicated region
        $region29: #{tpu_custom_call.1} parent=11 // pred_check
          %p230 = pneg %p151
        $region30: #{tpu_custom_call.1} parent=11 // pred_check_branch
          %232 = sbr.rel (%p230) target = $region32
        $region31: #{tpu_custom_call.1} parent=11 // pred_region
          _
        $region32: #{tpu_custom_call.1} parent=11 // pred_fallthru
          _
      $region12: #{tpu_custom_call.1} parent=5 // pred_fallthru
        _
      %p233 = scmp.lt.s32.totalorder %s20, 2
      // Predicated region
      $region33: #{tpu_custom_call.1} parent=5 // pred_check
        %p234 = pneg %p233
      $region34: #{tpu_custom_call.1} parent=5 // pred_check_branch
        %236 = sbr.rel (%p234) target = $region36
      $region35: #{tpu_custom_call.1} parent=5 // pred_region
        // Predicated region
        $region37: #{tpu_custom_call.1} parent=35 // pred_check
          %p237 = pneg %p40
        $region38: #{tpu_custom_call.1} parent=35 // pred_check_branch
          %239 = sbr.rel (%p237) target = $region40
        $region39: #{tpu_custom_call.1} parent=35 // pred_region
          %p240 = scmp.lt.s32.totalorder %s20, 1
          %s241 = scalar_select %p240, %s20, 1
          %s242 = smul.addr %s241, 8
          %s243 = scalar_lea.vmem %s0, %s242
        $region40: #{tpu_custom_call.1} parent=35 // pred_fallthru
          _
      $region36: #{tpu_custom_call.1} parent=5 // pred_fallthru
        _
      %p244 = scmp.le.s32.totalorder 1, %s20
      %p245 = scmp.lt.s32.totalorder %s20, 3
      %p246 = pnand %p244, %p245
      %p247 = pneg %p246
      // Predicated region
      $region41: #{tpu_custom_call.1} parent=5 // pred_check
        _
      $region42: #{tpu_custom_call.1} parent=5 // pred_check_branch
        %249 = sbr.rel (%p246) target = $region44
      $region43: #{tpu_custom_call.1} parent=5 // pred_region
        %s250 = ssub.s32 %s20, 1
        %p251 = scmp.lt.s32.totalorder %s25, 1
        %s252 = scalar_select %p251, %s25, 1
        %s253 = smul.addr %s252, 8
        %s254 = scalar_lea.vmem %s0, %s253
        %p255 = pneg %p46
        %p256 = pneg %p43
        %p257 = pneg %p67
        %p258 = pneg %p64
        %p259 = pneg %p88
        %p260 = pneg %p85
        %p261 = pneg %p109
        %p262 = pneg %p106
        %p263 = pneg %p130
        %p264 = pneg %p127
        %p265 = pneg %p151
        %p266 = pneg %p148
        %p267 = pneg %p177
        %p268 = pneg %p174
        %s269 = sand.u32 %s164, 1
        %s270 = scalar_lea.sflag [#allocation3], %s269
        %s271 = sand.u32 %s164, 1
        %s272 = smul.addr %s271, 2
        %s273 = scalar_lea.vmem [#allocation2], %s272
        %p274 = pneg %p203
        %p275 = pneg %p200
        %s276 = sand.u32 %s190, 1
        %s277 = scalar_lea.sflag [#allocation5], %s276
        %s278 = sand.u32 %s190, 1
        %s279 = scalar_lea.vmem [#allocation4], %s278
        %p280 = scmp.lt.s32.totalorder %s25, 1
        %s281 = scalar_select %p280, %s25, 1
        %s282 = smul.addr %s281, 8
        %s283 = scalar_lea.vmem %s0, %s282
        %v284 = vld [vmem:[%s283] sm:$0x3f]
        %v285 = vld [vmem:[%s1] sm:$0xff]
        %v286 = vld [vmem:[%s1 + $0x8] sm:$0xff]
        %v287 = vld [vmem:[%s1 + $0x10] sm:$0xff]
        %v288 = vld [vmem:[%s1 + $0x18] sm:$0xff]
        %v289 = vld [vmem:[%s2] sm:$0xff]
        %v290 = vld [vmem:[%s2 + $0x8] sm:$0xff]
        %v291 = vld [vmem:[%s2 + $0x10] sm:$0xff]
        %v292 = vld [vmem:[%s2 + $0x18] sm:$0xff]
        %294 = vset.pattern.permute.xlu0 0
        %295 = vperm.xlu0 %294, %v289
        %v296 = vpop.permute.xlu0 %295
        %299 = vset.pattern.permute.xlu0 0
        %300 = vperm.xlu0 %299, %v290
        %v301 = vpop.permute.xlu0 %300
        %304 = vset.pattern.permute.xlu0 0
        %305 = vperm.xlu0 %304, %v291
        %v306 = vpop.permute.xlu0 %305
        %309 = vset.pattern.permute.xlu0 0
        %310 = vperm.xlu0 %309, %v292
        %v311 = vpop.permute.xlu0 %310
        %vm313 = vcmask 48128
        %v315 = vsel %vm313, %v285, 0
        %v318 = vsel %vm313, %v286, 0
        %v321 = vsel %vm313, %v287, 0
        %v324 = vsel %vm313, %v288, 0
        %vm326 = vcmask 1045504
        %v328 = vsel %vm326, %v284, 0
        %330 = vmatprep.subr.mxu0 0.0
        %331 = vmatpush1.msra.mxu0 %v328
        %332 = vmatprep.subr.mxu0 0.0
        %333 = vmatpush1.msra.mxu0 0.0
        %334 = vmatprep.subr.mxu0 0.0
        %335 = vmatpush1.msra.mxu0 0.0
        %336 = vmatprep.subr.mxu0 0.0
        %337 = vmatpush1.msra.mxu0 0.0
        %338 = vmatprep.subr.mxu0 0.0
        %339 = vmatpush1.msra.mxu0 0.0
        %340 = vmatprep.subr.mxu0 0.0
        %341 = vmatpush1.msra.mxu0 0.0
        %342 = vmatprep.subr.mxu0 0.0
        %343 = vmatpush1.msra.mxu0 0.0
        %344 = vmatprep.subr.mxu0 0.0
        %345 = vmatpush1.msra.mxu0 0.0
        %346 = vmatprep.subr.mxu0 0.0
        %347 = vmatpush1.msra.mxu0 0.0
        %348 = vmatprep.subr.mxu0 0.0
        %349 = vmatpush1.msra.mxu0 0.0
        %350 = vmatprep.subr.mxu0 0.0
        %351 = vmatpush1.msra.mxu0 0.0
        %352 = vmatprep.subr.mxu0 0.0
        %353 = vmatpush1.msra.mxu0 0.0
        %354 = vmatprep.subr.mxu0 0.0
        %355 = vmatpush1.msra.mxu0 0.0
        %356 = vmatprep.subr.mxu0 0.0
        %357 = vmatpush1.msra.mxu0 0.0
        %358 = vmatprep.subr.mxu0 0.0
        %359 = vmatpush1.msra.mxu0 0.0
        %360 = vmatprep.subr.mxu0 0.0
        %361 = vmatpush1.msra.mxu0 0.0
        %362 = vmatprep.subr.mxu0 0.0
        %363 = vmatpush1.msra.mxu0 0.0
        %364 = vmatprep.subr.mxu0 0.0
        %365 = vmatpush1.msra.mxu0 0.0
        %366 = vmatprep.subr.mxu0 0.0
        %367 = vmatpush1.msra.mxu0 0.0
        %368 = vmatprep.subr.mxu0 0.0
        %369 = vmatpush1.msra.mxu0 0.0
        %370 = vmatprep.subr.mxu0 0.0
        %371 = vmatpush1.msra.mxu0 0.0
        %372 = vmatprep.subr.mxu0 0.0
        %373 = vmatpush1.msra.mxu0 0.0
        %374 = vmatprep.subr.mxu0 0.0
        %375 = vmatpush1.msra.mxu0 0.0
        %376 = vmatprep.subr.mxu0 0.0
        %377 = vmatpush1.msra.mxu0 0.0
        %378 = vmatprep.subr.mxu0 0.0
        %379 = vmatpush1.msra.mxu0 0.0
        %380 = vmatprep.subr.mxu0 0.0
        %381 = vmatpush1.msra.mxu0 0.0
        %382 = vmatprep.subr.mxu0 0.0
        %383 = vmatpush1.msra.mxu0 0.0
        %384 = vmatprep.subr.mxu0 0.0
        %385 = vmatpush1.msra.mxu0 0.0
        %386 = vmatprep.subr.mxu0 0.0
        %387 = vmatpush1.msra.mxu0 0.0
        %388 = vmatprep.subr.mxu0 0.0
        %389 = vmatpush1.msra.mxu0 0.0
        %390 = vmatprep.subr.mxu0 0.0
        %391 = vmatpush1.msra.mxu0 0.0
        %392 = vmatprep.subr.mxu0 0.0
        %393 = vmatpush1.msra.mxu0 0.0
        %394 = vmatprep.mubr.f32.mxu0 0.0
        %395 = vmatmul.mubr.f32.gmra.mrb[0].mxu0 %v315
        %v396 = vpop.f32.mrb[0].mxu0
        %v397 = vadd.f32 %v296, %v396
        %v398 = vpop.f32.mrb[0].mxu0
        %399 = vmatprep.mubr.f32.mxu0 0.0
        %400 = vmatmul.mubr.f32.gmra.mrb[0].mxu0 %v318
        %v401 = vpop.f32.mrb[0].mxu0
        %v402 = vadd.f32 %v301, %v401
        %v403 = vpop.f32.mrb[0].mxu0
        %404 = vmatprep.mubr.f32.mxu0 0.0
        %405 = vmatmul.mubr.f32.gmra.mrb[0].mxu0 %v321
        %v406 = vpop.f32.mrb[0].mxu0
        %v407 = vadd.f32 %v306, %v406
        %v408 = vpop.f32.mrb[0].mxu0
        %409 = vmatprep.mubr.f32.mxu0 0.0
        %410 = vmatmul.mubr.f32.gmra.mrb[0].mxu0 %v324
        %v411 = vpop.f32.mrb[0].mxu0
        %v412 = vadd.f32 %v311, %v411
        %v413 = vpop.f32.mrb[0].mxu0
        %414 = vdwg.mxu0
        %v415 = vtanh.pop %v397
        %v416 = vtanh.pop %v402
        %v417 = vtanh.pop %v407
        %v418 = vtanh.pop %v412
        %v419 = vld [vmem:[%s3] sm:$0x3]
        %v420 = vld [vmem:[%s4] sm:$0x3]
        %422 = vset.pattern.permute.xlu0 0
        %423 = vperm.xlu0 %422, %v420
        %v424 = vpop.permute.xlu0 %423
        %vm426 = vcmask 261120
        %v428 = vsel %vm426, %v419, 0
        %430 = vmatprep.subr.mxu0 0.0
        %431 = vmatpush1.msra.mxu0 %v415
        %432 = vmatprep.subr.mxu0 0.0
        %433 = vmatpush1.msra.mxu0 %v416
        %434 = vmatprep.subr.mxu0 0.0
        %435 = vmatpush1.msra.mxu0 %v417
        %436 = vmatprep.subr.mxu0 0.0
        %437 = vmatpush1.msra.mxu0 %v418
        %438 = vmatprep.subr.mxu0 0.0
        %439 = vmatpush1.msra.mxu0 0.0
        %440 = vmatprep.subr.mxu0 0.0
        %441 = vmatpush1.msra.mxu0 0.0
        %442 = vmatprep.subr.mxu0 0.0
        %443 = vmatpush1.msra.mxu0 0.0
        %444 = vmatprep.subr.mxu0 0.0
        %445 = vmatpush1.msra.mxu0 0.0
        %446 = vmatprep.subr.mxu0 0.0
        %447 = vmatpush1.msra.mxu0 0.0
        %448 = vmatprep.subr.mxu0 0.0
        %449 = vmatpush1.msra.mxu0 0.0
        %450 = vmatprep.subr.mxu0 0.0
        %451 = vmatpush1.msra.mxu0 0.0
        %452 = vmatprep.subr.mxu0 0.0
        %453 = vmatpush1.msra.mxu0 0.0
        %454 = vmatprep.subr.mxu0 0.0
        %455 = vmatpush1.msra.mxu0 0.0
        %456 = vmatprep.subr.mxu0 0.0
        %457 = vmatpush1.msra.mxu0 0.0
        %458 = vmatprep.subr.mxu0 0.0
        %459 = vmatpush1.msra.mxu0 0.0
        %460 = vmatprep.subr.mxu0 0.0
        %461 = vmatpush1.msra.mxu0 0.0
        %462 = vmatprep.subr.mxu0 0.0
        %463 = vmatpush1.msra.mxu0 0.0
        %464 = vmatprep.subr.mxu0 0.0
        %465 = vmatpush1.msra.mxu0 0.0
        %466 = vmatprep.subr.mxu0 0.0
        %467 = vmatpush1.msra.mxu0 0.0
        %468 = vmatprep.subr.mxu0 0.0
        %469 = vmatpush1.msra.mxu0 0.0
        %470 = vmatprep.subr.mxu0 0.0
        %471 = vmatpush1.msra.mxu0 0.0
        %472 = vmatprep.subr.mxu0 0.0
        %473 = vmatpush1.msra.mxu0 0.0
        %474 = vmatprep.subr.mxu0 0.0
        %475 = vmatpush1.msra.mxu0 0.0
        %476 = vmatprep.subr.mxu0 0.0
        %477 = vmatpush1.msra.mxu0 0.0
        %478 = vmatprep.subr.mxu0 0.0
        %479 = vmatpush1.msra.mxu0 0.0
        %480 = vmatprep.subr.mxu0 0.0
        %481 = vmatpush1.msra.mxu0 0.0
        %482 = vmatprep.subr.mxu0 0.0
        %483 = vmatpush1.msra.mxu0 0.0
        %484 = vmatprep.subr.mxu0 0.0
        %485 = vmatpush1.msra.mxu0 0.0
        %486 = vmatprep.subr.mxu0 0.0
        %487 = vmatpush1.msra.mxu0 0.0
        %488 = vmatprep.subr.mxu0 0.0
        %489 = vmatpush1.msra.mxu0 0.0
        %490 = vmatprep.subr.mxu0 0.0
        %491 = vmatpush1.msra.mxu0 0.0
        %492 = vmatprep.subr.mxu0 0.0
        %493 = vmatpush1.msra.mxu0 0.0
        %494 = vmatprep.mubr.f32.mxu0 0.0
        %495 = vmatmul.mubr.f32.gmra.mrb[0].mxu0 %v428
        %v496 = vpop.f32.mrb[0].mxu0
        %v497 = vadd.f32 %v424, %v496
        %v498 = vpop.f32.mrb[0].mxu0
        %499 = vdwg.mxu0
        %v500 = vadd.f32 %v284, %v497
        %501 = vst [vmem:[%s273] sm:$0x3] %v500
        %v502 = vmul.f32 %v415, %v415
        %v503 = vmul.f32 %v416, %v416
        %v504 = vmul.f32 %v417, %v417
        %v505 = vmul.f32 %v418, %v418
        %v506 = vsub.f32 1.0, %v502
        %v507 = vsub.f32 1.0, %v503
        %v508 = vsub.f32 1.0, %v504
        %v509 = vsub.f32 1.0, %v505
        %v510 = vld [vmem:[%s5] sm:$0xf]
        %v512 = vsel %vm426, %v510, 0
        %514 = vmatprep.subr.mxu0 0.0
        %515 = vmatpush1.msra.mxu0 %v506
        %516 = vmatprep.subr.mxu0 0.0
        %517 = vmatpush1.msra.mxu0 %v507
        %518 = vmatprep.subr.mxu0 0.0
        %519 = vmatpush1.msra.mxu0 %v508
        %520 = vmatprep.subr.mxu0 0.0
        %521 = vmatpush1.msra.mxu0 %v509
        %522 = vmatprep.subr.mxu0 0.0
        %523 = vmatpush1.msra.mxu0 0.0
        %524 = vmatprep.subr.mxu0 0.0
        %525 = vmatpush1.msra.mxu0 0.0
        %526 = vmatprep.subr.mxu0 0.0
        %527 = vmatpush1.msra.mxu0 0.0
        %528 = vmatprep.subr.mxu0 0.0
        %529 = vmatpush1.msra.mxu0 0.0
        %530 = vmatprep.subr.mxu0 0.0
        %531 = vmatpush1.msra.mxu0 0.0
        %532 = vmatprep.subr.mxu0 0.0
        %533 = vmatpush1.msra.mxu0 0.0
        %534 = vmatprep.subr.mxu0 0.0
        %535 = vmatpush1.msra.mxu0 0.0
        %536 = vmatprep.subr.mxu0 0.0
        %537 = vmatpush1.msra.mxu0 0.0
        %538 = vmatprep.subr.mxu0 0.0
        %539 = vmatpush1.msra.mxu0 0.0
        %540 = vmatprep.subr.mxu0 0.0
        %541 = vmatpush1.msra.mxu0 0.0
        %542 = vmatprep.subr.mxu0 0.0
        %543 = vmatpush1.msra.mxu0 0.0
        %544 = vmatprep.subr.mxu0 0.0
        %545 = vmatpush1.msra.mxu0 0.0
        %546 = vmatprep.subr.mxu0 0.0
        %547 = vmatpush1.msra.mxu0 0.0
        %548 = vmatprep.subr.mxu0 0.0
        %549 = vmatpush1.msra.mxu0 0.0
        %550 = vmatprep.subr.mxu0 0.0
        %551 = vmatpush1.msra.mxu0 0.0
        %552 = vmatprep.subr.mxu0 0.0
        %553 = vmatpush1.msra.mxu0 0.0
        %554 = vmatprep.subr.mxu0 0.0
        %555 = vmatpush1.msra.mxu0 0.0
        %556 = vmatprep.subr.mxu0 0.0
        %557 = vmatpush1.msra.mxu0 0.0
        %558 = vmatprep.subr.mxu0 0.0
        %559 = vmatpush1.msra.mxu0 0.0
        %560 = vmatprep.subr.mxu0 0.0
        %561 = vmatpush1.msra.mxu0 0.0
        %562 = vmatprep.subr.mxu0 0.0
        %563 = vmatpush1.msra.mxu0 0.0
        %564 = vmatprep.subr.mxu0 0.0
        %565 = vmatpush1.msra.mxu0 0.0
        %566 = vmatprep.subr.mxu0 0.0
        %567 = vmatpush1.msra.mxu0 0.0
        %568 = vmatprep.subr.mxu0 0.0
        %569 = vmatpush1.msra.mxu0 0.0
        %570 = vmatprep.subr.mxu0 0.0
        %571 = vmatpush1.msra.mxu0 0.0
        %572 = vmatprep.subr.mxu0 0.0
        %573 = vmatpush1.msra.mxu0 0.0
        %574 = vmatprep.subr.mxu0 0.0
        %575 = vmatpush1.msra.mxu0 0.0
        %576 = vmatprep.subr.mxu0 0.0
        %577 = vmatpush1.msra.mxu0 0.0
        %578 = vmatprep.mubr.f32.mxu0 0.0
        %579 = vmatmul.mubr.f32.gmra.mrb[0].mxu0 %v512
        %v580 = vpop.f32.mrb[0].mxu0
        %v581 = vadd.f32 0.0, %v580
        %v582 = vpop.f32.mrb[0].mxu0
        %583 = vdwg.mxu0
        %v584 = vadd.f32 %v581, 1.0
        %v586 = vrot.slane %v584, 3
        %v588 = vmul.f32 %v584, %v586
        %v590 = vrot.slane %v581, 1
        %v592 = vmul.f32 %v581, %v590
        %v594 = vrot.slane %v592, 1
        %v596 = vsub.f32 %v588, %v594
        %v597 = vand.u32 2147483647, %v596
        %v598 = vlog2.pop %v597
        %v599 = vmul.f32 %v598, 0.6931472
        %v600 = vsub.f32 0.0, %v599
        %601 = vst [vmem:[%s279] sm:$0x1] %v600
        %s602 = sand.u32 %s164, 1
        %s603 = scalar_lea.sflag [#allocation3], %s602
        %s604 = sand.u32 %s164, 1
        %s605 = smul.addr %s604, 2
        %s606 = scalar_lea.vmem [#allocation2], %s605
        %s607 = sand.u32 %s190, 1
        %s608 = scalar_lea.sflag [#allocation5], %s607
        %s609 = sand.u32 %s190, 1
        %s610 = scalar_lea.vmem [#allocation4], %s609
        // Predicated region
        $region45: #{tpu_custom_call.1} parent=43 // pred_check
          %p611 = pneg %p174
        $region46: #{tpu_custom_call.1} parent=43 // pred_check_branch
          %613 = sbr.rel (%p611) target = $region48
        $region47: #{tpu_custom_call.1} parent=43 // pred_region
          %s615 = ssub.s32 32, 32
          %616 = vsyncadd %s603, %s615
          %s617 = smul.addr %s25, 32
          %s618 = scalar_lea.hbm %s6, %s617
          %s620 = sshll.u32 %s606, 4
          %s621 = int_to_ptr.vmem [resolvable:$true] %s620
          %623 = dma.vmem_to_hbm [thread:$0]  %s621, 32, %s618, %s603
        $region48: #{tpu_custom_call.1} parent=43 // pred_fallthru
          _
        // Predicated region
        $region49: #{tpu_custom_call.1} parent=43 // pred_check
          %p624 = pneg %p200
        $region50: #{tpu_custom_call.1} parent=43 // pred_check_branch
          %626 = sbr.rel (%p624) target = $region52
        $region51: #{tpu_custom_call.1} parent=43 // pred_region
          %s628 = ssub.s32 16, 16
          %629 = vsyncadd %s608, %s628
          %s630 = smul.addr %s25, 16
          %s631 = scalar_lea.hbm %s7, %s630
          %s633 = sshll.u32 %s610, 4
          %s634 = int_to_ptr.vmem [resolvable:$true] %s633
          %636 = dma.vmem_to_hbm [thread:$0]  %s634, 16, %s631, %s608
        $region52: #{tpu_custom_call.1} parent=43 // pred_fallthru
          _
      $region44: #{tpu_custom_call.1} parent=5 // pred_fallthru
        _
      %p637 = scmp.le.s32.totalorder 2, %s20
      // Predicated region
      $region53: #{tpu_custom_call.1} parent=5 // pred_check
        %p638 = pneg %p637
      $region54: #{tpu_custom_call.1} parent=5 // pred_check_branch
        %640 = sbr.rel (%p638) target = $region56
      $region55: #{tpu_custom_call.1} parent=5 // pred_region
        %s641 = ssub.s32 %s20, 2
        // Predicated region
        $region57: #{tpu_custom_call.1} parent=55 // pred_check
          %p642 = pneg %p180
        $region58: #{tpu_custom_call.1} parent=55 // pred_check_branch
          %644 = sbr.rel (%p642) target = $region60
        $region59: #{tpu_custom_call.1} parent=55 // pred_region
          %s645 = sand.u32 %s165, 1
          %s646 = scalar_lea.sflag [#allocation3], %s645
          %s647 = sand.u32 %s165, 1
          %s648 = smul.addr %s647, 2
          %s649 = scalar_lea.vmem [#allocation2], %s648
          %650 = dma.done %s646, 32
        $region60: #{tpu_custom_call.1} parent=55 // pred_fallthru
          _
        // Predicated region
        $region61: #{tpu_custom_call.1} parent=55 // pred_check
          %p651 = pneg %p206
        $region62: #{tpu_custom_call.1} parent=55 // pred_check_branch
          %653 = sbr.rel (%p651) target = $region64
        $region63: #{tpu_custom_call.1} parent=55 // pred_region
          %s654 = sand.u32 %s191, 1
          %s655 = scalar_lea.sflag [#allocation5], %s654
          %s656 = sand.u32 %s191, 1
          %s657 = scalar_lea.vmem [#allocation4], %s656
          %658 = dma.done %s655, 16
        $region64: #{tpu_custom_call.1} parent=55 // pred_fallthru
          _
      $region56: #{tpu_custom_call.1} parent=5 // pred_fallthru
        _
    $region6: #{tpu_custom_call.1} parent=1 // loop_footer
      %s24 = sadd.s32 1, %s20
    $region7: #{tpu_custom_call.1} parent=1 // loop_footer_branch
      %19 = sbr.rel target = $region3
    $region8: #{tpu_custom_call.1} parent=1 // loop_exit
      _
    %659 = vsyncpa [#allocation3], 1
    %s660 = scalar_lea.sflag [#allocation3], 1
    %661 = vsyncpa %s660, 1
    %662 = vsyncpa [#allocation5], 1
    %s663 = scalar_lea.sflag [#allocation5], 1
    %664 = vsyncpa %s663, 1

</llo_original>
